<compile_context>
chip_gen: v5e
topology: v5e:2x2
jax: 0.10.0
libtpu: 0.0.40
codegen_flags: <defaults>
</compile_context>

<pallas_src>
import functools
import math

import jax
import jax.numpy as jnp
from jax import lax
from jax.experimental import pallas as pl
from jax.experimental.pallas import tpu as pltpu

_EPS = 1e-8  # torch.nn.CosineSimilarity default eps


def _round_up(x, m):
    return (x + m - 1) // m * m


def _vmem_capacity_bytes():
    try:
        return int(pltpu.get_tpu_info().vmem_capacity_bytes)
    except Exception:
        return 64 * 1024 * 1024  # v7x worst case


def _pick_row_tile(m, target=256):
    """Row-tile: <= target, multiple of 8, and >=2 grid steps when m is big."""
    if m <= 16:
        return max(8, _round_up(m, 8))
    # >=2 grid steps so the grid shards across both TensorCores on v7x.
    return min(target, _round_up(pl.cdiv(m, 2), 8))


# ---------------------------------------------------------------------------
# Kernels
# ---------------------------------------------------------------------------

def _cross_sim_kernel(x_ref, y_ref, xn_ref, yn_ref, o_ref, *, eps_t):
    """o[i, j] = <x_i, y_j> / max(|x_i| * |y_j| * temp, eps * temp).

    x_ref: [TM, H], y_ref: [TN, H], xn_ref: [TM, 1] (|x_i|),
    yn_ref: [1, TN] (|y_j| * temp, lane-dense), o_ref: [TM, TN].
    """
    # MXU matmul in the input dtype, f32 accumulation (contract over H).
    dots = lax.dot_general(x_ref[...], y_ref[...], (((1,), (1,)), ((), ())),
                           preferred_element_type=jnp.float32)        # [TM, TN]
    # Norms are precomputed outside the grid; pure VPU broadcast multiply here
    # ([TM,1] broadcasts over lanes, [1,TN] broadcasts over sublanes).
    denom = jnp.maximum(xn_ref[...] * yn_ref[...], eps_t)             # [TM, TN]
    # temp already folded into denom; exact reciprocal keeps score precision
    # (use approx=True if ~1e-3 relative error on logits is acceptable).
    o_ref[...] = (dots * pl.reciprocal(denom, approx=False)).astype(o_ref.dtype)


def _paired_sim_kernel(x_ref, y_ref, o_ref, *, temp, eps_t):
    """Row-wise cosine similarity / temp. x_ref/y_ref: [TR, H], o_ref: [TR, 1]."""
    x = x_ref[...].astype(jnp.float32)
    y = y_ref[...].astype(jnp.float32)
    dot = jnp.sum(x * y, axis=-1, keepdims=True)            # [TR, 1]
    nx2 = jnp.sum(x * x, axis=-1, keepdims=True)
    ny2 = jnp.sum(y * y, axis=-1, keepdims=True)
    denom = jnp.maximum(jnp.sqrt(nx2 * ny2) * temp, eps_t)  # one sqrt, temp folded
    o_ref[...] = (dot * pl.reciprocal(denom, approx=False)).astype(o_ref.dtype)


# ---------------------------------------------------------------------------
# pallas_call wrappers
# ---------------------------------------------------------------------------

def _cross_similarity(x2d, y2d, temp, out_dtype, eps=_EPS):
    """x2d: [M, H], y2d: [N, H] -> [M, N] cosine-similarity / temp."""
    M, H = x2d.shape
    N, _ = y2d.shape
    if x2d.dtype != out_dtype:
        x2d = x2d.astype(out_dtype)
    if y2d.dtype != out_dtype:
        y2d = y2d.astype(out_dtype)

    # Norms hoisted out of the grid (tiny one-shot f32 reductions).  1/temp is
    # folded into the lane-dense y-norm row so the kernel epilogue is a single
    # multiply per output element.
    xf = x2d.astype(jnp.float32)
    yf = y2d.astype(jnp.float32)
    x_norm = jnp.sqrt(jnp.sum(xf * xf, axis=-1, keepdims=True))          # [M, 1]
    y_norm_t = (jnp.sqrt(jnp.sum(yf * yf, axis=-1)) * temp)[None, :]     # [1, N]
    eps_t = float(eps) * float(temp)

    in_bytes = jnp.dtype(out_dtype).itemsize
    out_bytes = jnp.dtype(out_dtype).itemsize
    cap = _vmem_capacity_bytes()
    TM = _pick_row_tile(M)
    kernel = functools.partial(_cross_sim_kernel, eps_t=eps_t)

    # --- Path A: keep y (and its norm row) fully VMEM-resident; stream x tiles.
    # Conservative accounting: 2x per input spec (double-buffering) + out tiles.
    resident_bytes = (2 * (N * H + TM * H) * in_bytes
                      + 2 * TM * N * out_bytes + 2 * (TM + N) * 4)
    if resident_bytes <= cap // 2:
        vmem_limit = int(min(cap, max(2 * resident_bytes, 32 << 20)))
        return pl.pallas_call(
            kernel,
            out_shape=jax.ShapeDtypeStruct((M, N), out_dtype),
            grid=(pl.cdiv(M, TM),),
            in_specs=[
                pl.BlockSpec((TM, H), lambda i: (i, 0)),   # streamed x rows
                pl.BlockSpec((N, H), lambda i: (0, 0)),    # y resident (DMA'd once)
                pl.BlockSpec((TM, 1), lambda i: (i, 0)),   # |x_i|
                pl.BlockSpec((1, N), lambda i: (0, 0)),    # |y_j| * temp (resident)
            ],
            out_specs=pl.BlockSpec((TM, N), lambda i: (i, 0)),
            compiler_params=pltpu.CompilerParams(
                dimension_semantics=("parallel",),
                vmem_limit_bytes=vmem_limit),
        )(x2d, y2d, x_norm, y_norm_t)

    # --- Path B: y too large for residency — tile both M and N (256-wide).
    # TODO(synk): for very large H add an "arbitrary" grid axis over H with an
    # f32 accumulator instead of loading the full H per tile.
    TN = 256 if N >= 256 else (128 if N >= 128 else N)
    tile_bytes = (2 * (TM * H + TN * H) * in_bytes
                  + 2 * TM * TN * out_bytes + 2 * (TM + TN) * 4)
    vmem_limit = int(min(cap, max(2 * tile_bytes, 32 << 20)))
    return pl.pallas_call(
        kernel,
        out_shape=jax.ShapeDtypeStruct((M, N), out_dtype),
        grid=(pl.cdiv(M, TM), pl.cdiv(N, TN)),
        in_specs=[
            pl.BlockSpec((TM, H), lambda i, j: (i, 0)),
            pl.BlockSpec((TN, H), lambda i, j: (j, 0)),
            pl.BlockSpec((TM, 1), lambda i, j: (i, 0)),
            pl.BlockSpec((1, TN), lambda i, j: (0, j)),
        ],
        out_specs=pl.BlockSpec((TM, TN), lambda i, j: (i, j)),
        compiler_params=pltpu.CompilerParams(
            dimension_semantics=("parallel", "parallel"),
            vmem_limit_bytes=vmem_limit),
    )(x2d, y2d, x_norm, y_norm_t)


def _paired_similarity(xf, yf, temp, out_dtype, eps=_EPS):
    """xf, yf: [R, H] (same shape) -> [R] cosine-similarity / temp."""
    R, H = xf.shape
    if xf.dtype != out_dtype:
        xf = xf.astype(out_dtype)
    if yf.dtype != out_dtype:
        yf = yf.astype(out_dtype)

    # Bound live f32 temporaries (~4 x [TR, H] f32) to a couple of MiB so the
    # kernel stays HBM-bound instead of spill-bound (matters on v7x / 64 MiB VMEM).
    budget_rows = max(8, (2 << 20) // max(16 * H, 1))
    TR = max(8, min(256, _round_up(R, 8), _round_up(budget_rows, 8)))

    kernel = functools.partial(_paired_sim_kernel, temp=float(temp),
                               eps_t=float(eps) * float(temp))
    out = pl.pallas_call(
        kernel,
        out_shape=jax.ShapeDtypeStruct((R, 1), out_dtype),
        grid=(pl.cdiv(R, TR),),
        in_specs=[
            pl.BlockSpec((TR, H), lambda i: (i, 0)),
            pl.BlockSpec((TR, H), lambda i: (i, 0)),
        ],
        out_specs=pl.BlockSpec((TR, 1), lambda i: (i, 0)),
        compiler_params=pltpu.CompilerParams(
            dimension_semantics=("parallel",)),
    )(xf, yf)
    # TODO(synk): make the paired output lane-dense ([*,128] tiles) if this
    # fallback path ever becomes hot; [TR,1] stores are single-lane masked vst.
    return out[:, 0]


class Similarity:
    """JAX/Pallas port of SimCSE's Similarity: cosine(x, y, dim=-1) / temp."""

    def __init__(self, temp, eps=_EPS):
        self.temp = float(temp)
        self.eps = float(eps)

    def __call__(self, x, y):
        x = jnp.asarray(x)
        y = jnp.asarray(y)
        out_dtype = jnp.promote_types(x.dtype, y.dtype)

        # SimCSE hot path: sim(z1[:, None, :], z2[None, :, :]) -> [B1, B2].
        if (x.ndim == 3 and y.ndim == 3 and x.shape[-1] == y.shape[-1]):
            if x.shape[1] == 1 and y.shape[0] == 1:
                return _cross_similarity(x[:, 0, :], y[0], self.temp,
                                         out_dtype, self.eps)
            if x.shape[0] == 1 and y.shape[1] == 1:  # swapped unsqueeze order
                return _cross_similarity(y[:, 0, :], x[0], self.temp,
                                         out_dtype, self.eps)

        # General broadcastable case (matches torch broadcasting semantics).
        # Note: materializes the broadcast shape in HBM — fine for the paired
        # [B,H]x[B,H] case; avoid calling huge cross shapes through this path.
        full = jnp.broadcast_shapes(x.shape, y.shape)
        xb = jnp.broadcast_to(x, full)
        yb = jnp.broadcast_to(y, full)
        h = full[-1]
        rows = math.prod(full[:-1]) if len(full) > 1 else 1
        out = _paired_similarity(xb.reshape(rows, h), yb.reshape(rows, h),
                                 self.temp, out_dtype, self.eps)
        return out.reshape(full[:-1])


# ---------------------------------------------------------------------------
# Reference (plain JAX) for correctness checking
# ---------------------------------------------------------------------------

def _ref_similarity(x, y, temp, eps=_EPS):
    x = jnp.asarray(x, jnp.float32)
    y = jnp.asarray(y, jnp.float32)
    dot = jnp.sum(x * y, axis=-1)
    nx = jnp.sqrt(jnp.sum(x * x, axis=-1))
    ny = jnp.sqrt(jnp.sum(y * y, axis=-1))
    return dot / jnp.maximum(nx * ny, eps) / temp


if __name__ == "__main__":
    B, H = 8, 32
    temp = 0.05  # SimCSE default

    key = jax.random.PRNGKey(0)
    k1, k2, k3 = jax.random.split(key, 3)
    z1 = jax.random.normal(k1, (B, H), dtype=jnp.float32)
    z2 = jax.random.normal(k2, (B, H), dtype=jnp.float32)
    z3 = jax.random.normal(k3, (2, B, H), dtype=jnp.float32)

    # Exercise the eps clamp with an all-zero row.
    z1 = z1.at[0].set(0.0)

    sim = Similarity(temp)
    ok = True

    # 1) SimCSE hot path: [B,1,H] x [1,B,H] -> [B,B]  (cross kernel / MXU)
    out = jax.block_until_ready(sim(z1[:, None, :], z2[None, :, :]))
    ref = _ref_similarity(z1[:, None, :], z2[None, :, :], temp)
    ok &= (out.shape == (B, B)) and bool(
        jnp.allclose(out.astype(jnp.float32), ref, atol=1e-4, rtol=1e-4))

    # 2) paired rows: [B,H] x [B,H] -> [B]
    out = jax.block_until_ready(sim(z1, z2))
    ref = _ref_similarity(z1, z2, temp)
    ok &= (out.shape == (B,)) and bool(
        jnp.allclose(out.astype(jnp.float32), ref, atol=1e-4, rtol=1e-4))

    # 3) general broadcast: [2,B,H] x [B,H] -> [2,B]
    out = jax.block_until_ready(sim(z3, z2))
    ref = _ref_similarity(z3, z2, temp)
    ok &= (out.shape == (2, B)) and bool(
        jnp.allclose(out.astype(jnp.float32), ref, atol=1e-4, rtol=1e-4))

    print("KERNEL_OK" if ok else "KERNEL_MISMATCH")
</pallas_src>

<mosaic_0001>
module attributes {stable_mosaic.version = 11 : i64} {
  func.func @_cross_sim_kernel(%arg0: i32, %arg1: memref<8x32xf32, #tpu.memory_space<vmem>>, %arg2: memref<8x32xf32, #tpu.memory_space<vmem>>, %arg3: memref<8x1xf32, #tpu.memory_space<vmem>>, %arg4: memref<1x8xf32, #tpu.memory_space<vmem>>, %arg5: memref<8x8xf32, #tpu.memory_space<vmem>>) attributes {dimension_semantics = [#tpu.dimension_semantics<parallel>], iteration_bounds = array<i64: 1>, scalar_prefetch = 0 : i64, scratch_operands = 0 : i64, tpu.core_type = #tpu.core_type<tc>, window_params = [{transform_indices = @transform_0, window_bounds = array<i64: 8, 32>}, {pipeline_mode = #tpu.pipeline_mode<synchronous>, transform_indices = @transform_1, window_bounds = array<i64: 8, 32>}, {transform_indices = @transform_2, window_bounds = array<i64: 8, 1>}, {pipeline_mode = #tpu.pipeline_mode<synchronous>, transform_indices = @transform_3, window_bounds = array<i64: 1, 8>}, {transform_indices = @transform_4, window_bounds = array<i64: 8, 8>}]} {
    %c0 = arith.constant 0 : index
    %c0_0 = arith.constant 0 : index
    %0 = vector.load %arg1[%c0, %c0_0] : memref<8x32xf32, #tpu.memory_space<vmem>>, vector<8x32xf32>
    %c0_1 = arith.constant 0 : index
    %c0_2 = arith.constant 0 : index
    %1 = vector.load %arg2[%c0_1, %c0_2] : memref<8x32xf32, #tpu.memory_space<vmem>>, vector<8x32xf32>
    %cst = arith.constant dense<0.000000e+00> : vector<8x8xf32>
    %2 = tpu.matmul %0, %1, %cst {dimension_numbers = #tpu.dot_dimension_numbers<[1], [1], [0], [0], [0, 0, 1, 0], [], []>} : vector<8x32xf32>, vector<8x32xf32>, vector<8x8xf32> -> vector<8x8xf32>
    %c0_3 = arith.constant 0 : index
    %c0_4 = arith.constant 0 : index
    %3 = vector.load %arg3[%c0_3, %c0_4] : memref<8x1xf32, #tpu.memory_space<vmem>>, vector<8x1xf32>
    %c0_5 = arith.constant 0 : index
    %c0_6 = arith.constant 0 : index
    %4 = vector.load %arg4[%c0_5, %c0_6] : memref<1x8xf32, #tpu.memory_space<vmem>>, vector<1x8xf32>
    %5 = vector.broadcast %3 : vector<8x1xf32> to vector<8x8xf32>
    %6 = vector.broadcast %4 : vector<1x8xf32> to vector<8x8xf32>
    %7 = arith.mulf %5, %6 : vector<8x8xf32>
    %cst_7 = arith.constant 5.000000e-10 : f32
    %8 = vector.broadcast %cst_7 : f32 to vector<8x8xf32>
    %9 = arith.maximumf %7, %8 : vector<8x8xf32>
    %10 = tpu.reciprocal %9 : vector<8x8xf32> -> vector<8x8xf32>
    %11 = arith.mulf %2, %10 : vector<8x8xf32>
    %c0_8 = arith.constant 0 : index
    %c0_9 = arith.constant 0 : index
    %12 = vector.load %arg5[%c0_8, %c0_9] : memref<8x8xf32, #tpu.memory_space<vmem>>, vector<8x8xf32>
    tpu.vector_store %arg5[%c0_8, %c0_9], %11 {strides = array<i32>} : memref<8x8xf32, #tpu.memory_space<vmem>>, vector<8x8xf32>,
    return
  }
  func.func @transform_0(%arg0: i32) -> (i32, i32) {
    %c0_i32 = arith.constant 0 : i32
    %c0_i32_0 = arith.constant 0 : i32
    return %arg0, %c0_i32 : i32, i32
  }
  func.func @transform_1(%arg0: i32) -> (i32, i32) {
    %c0_i32 = arith.constant 0 : i32
    %c0_i32_0 = arith.constant 0 : i32
    %c0_i32_1 = arith.constant 0 : i32
    return %c0_i32, %c0_i32_0 : i32, i32
  }
  func.func @transform_2(%arg0: i32) -> (i32, i32) {
    %c0_i32 = arith.constant 0 : i32
    %c0_i32_0 = arith.constant 0 : i32
    return %arg0, %c0_i32 : i32, i32
  }
  func.func @transform_3(%arg0: i32) -> (i32, i32) {
    %c0_i32 = arith.constant 0 : i32
    %c0_i32_0 = arith.constant 0 : i32
    %c0_i32_1 = arith.constant 0 : i32
    return %c0_i32, %c0_i32_0 : i32, i32
  }
  func.func @transform_4(%arg0: i32) -> (i32, i32) {
    %c0_i32 = arith.constant 0 : i32
    %c0_i32_0 = arith.constant 0 : i32
    return %arg0, %c0_i32 : i32, i32
  }
}

</mosaic_0001>

<llo_original>
// kernel: tpu_custom_call.1
$region0: #{tpu_custom_call.1}
  #allocation0 [shape = 'u32[]', space=smem, size = 0x4, offset = 0x4, fixed_abs, tag = 'smem constant byte address 0x4 - core index']
  #allocation1 [shape = 'u32[72,128]{1,0:T(1,128)}', space=vmem, size = 0x9000, scoped, tag = 'internal scratch']
  %s0 = inlined_call_operand.vmem [shape: f32[8,32], index: 0, kind: input, shape index: {}]
  %s1 = inlined_call_operand.hbm [shape: f32[8,32], index: 1, kind: input, shape index: {}]
  %s2 = inlined_call_operand.vmem [shape: f32[8,1], index: 2, kind: input, shape index: {}]
  %s3 = inlined_call_operand.vmem [shape: f32[1,8], index: 3, kind: input, shape index: {}]
  %s4 = inlined_call_operand.hbm [shape: f32[8,8], index: 4, kind: output, shape index: {}]
  %s5 = sld [smem:[#allocation0]]
  $region30: #{tpu_custom_call.1} parent=0
    _
  %s7 = ssub.s32 1, %s5
  %s8 = scalar_select 0, %s7, %s5
  $region1: #{tpu_custom_call.1} parent=0
    #allocation2 [shape = 'u8[4096]{0}', space=vmem, size = 0x1000, scoped, tag = 'input window, operand 1, single buffered']
    #allocation3 [shape = 's32[1]{0}', space=sflag, size = 0x4, scoped, tag = 'scoped memory for tpu_custom_call.1']
    #allocation4 [shape = 's32[1]{0}', space=sflag, size = 0x4, scoped, tag = 'scoped memory for tpu_custom_call.1']
    #allocation5 [shape = 'u8[4096]{0}', space=vmem, size = 0x1000, scoped, tag = 'output window, operand 0, single buffered']
    %9 = vsyncpa [#allocation3], 0
    %10 = vsyncpa [#allocation4], 0
    // Predicated region
    $region2: #{tpu_custom_call.1} parent=1 // pred_check
      _
    $region3: #{tpu_custom_call.1} parent=1 // pred_check_branch
      %12 = sbr.rel (0) target = $region5
    $region4: #{tpu_custom_call.1} parent=1 // pred_region
      _
    $region5: #{tpu_custom_call.1} parent=1 // pred_fallthru
      _
    // Predicated region
    $region6: #{tpu_custom_call.1} parent=1 // pred_check
      _
    $region7: #{tpu_custom_call.1} parent=1 // pred_check_branch
      %14 = sbr.rel (0) target = $region9
    $region8: #{tpu_custom_call.1} parent=1 // pred_region
      %16 = vsyncadd [#allocation3], 0
      %s18 = sshll.u32 %s1, 4
      %s19 = int_to_ptr.hbm [resolvable:$true] %s18
      %s20 = sshll.u32 [#allocation2], 4
      %s21 = int_to_ptr.vmem [resolvable:$true] %s20
      %23 = dma.hbm_to_vmem [thread:$0]  %s19, 128, %s21, [#allocation3]
    $region9: #{tpu_custom_call.1} parent=1 // pred_fallthru
      _
    // Predicated region
    $region10: #{tpu_custom_call.1} parent=1 // pred_check
      _
    $region11: #{tpu_custom_call.1} parent=1 // pred_check_branch
      %25 = sbr.rel (0) target = $region13
    $region12: #{tpu_custom_call.1} parent=1 // pred_region
      _
    $region13: #{tpu_custom_call.1} parent=1 // pred_fallthru
      _
    // Predicated region
    $region14: #{tpu_custom_call.1} parent=1 // pred_check
      _
    $region15: #{tpu_custom_call.1} parent=1 // pred_check_branch
      %27 = sbr.rel (0) target = $region17
    $region16: #{tpu_custom_call.1} parent=1 // pred_region
      _
    $region17: #{tpu_custom_call.1} parent=1 // pred_fallthru
      _
    // Predicated region
    $region18: #{tpu_custom_call.1} parent=1 // pred_check
      _
    $region19: #{tpu_custom_call.1} parent=1 // pred_check_branch
      %29 = sbr.rel (0) target = $region21
    $region20: #{tpu_custom_call.1} parent=1 // pred_region
      %31 = dma.done [#allocation3], 128
    $region21: #{tpu_custom_call.1} parent=1 // pred_fallthru
      _
    %v32 = vld [vmem:[%s0] sm:$0xff]
    %v33 = vld [vmem:[#allocation2] sm:$0xff]
    %vm34 = vcmask 261120
    %v36 = vsel %vm34, %v32, 0
    %v39 = vsel %vm34, %v33, 0
    %41 = vmatpush.xpose.msra.mxu0 0.0
    %42 = vmatpush.xpose.msra.mxu0 0.0
    %43 = vmatpush.xpose.msra.mxu0 0.0
    %44 = vmatpush.xpose.msra.mxu0 0.0
    %45 = vmatpush.xpose.msra.mxu0 0.0
    %46 = vmatpush.xpose.msra.mxu0 0.0
    %47 = vmatpush.xpose.msra.mxu0 0.0
    %48 = vmatpush.xpose.msra.mxu0 0.0
    %49 = vmatpush.xpose.msra.mxu0 0.0
    %50 = vmatpush.xpose.msra.mxu0 0.0
    %51 = vmatpush.xpose.msra.mxu0 0.0
    %52 = vmatpush.xpose.msra.mxu0 0.0
    %53 = vmatpush.xpose.msra.mxu0 0.0
    %54 = vmatpush.xpose.msra.mxu0 0.0
    %55 = vmatpush.xpose.msra.mxu0 0.0
    %56 = vmatpush.xpose.msra.mxu0 %v39
    %57 = vmatmul.f32.gmra.mxu0 %v36
    %v58 = vpop.f32.mrf.mxu0
    %v59 = vadd.f32 0.0, %v58
    %60 = vdwg.mxu0
    %v61 = vld [vmem:[%s2] sm:$0xff]
    %v62 = vld [vmem:[%s3] sm:$0x1]
    %64 = vset.pattern.permute.xlu0 0
    %65 = vperm.xlu0 %64, %v61
    %v66 = vpop.permute.xlu0 %65
    %v69 = vperm.slane %v62, 0
    %v71 = vmul.f32 %v66, %v69
    %v72 = vmax.f32 %v71, 5e-10
    %v73 = vrcp.pop %v72
    %v74 = vmul.f32 %v72, %v73
    %v75 = vsub.f32 1.0, %v74
    %v76 = vmul.f32 %v73, %v75
    %v77 = vadd.f32 %v73, %v76
    %vm78 = vweird.f32 %v72
    %vm79 = vweird.f32 %v73
    %vm80 = vmor %vm78, %vm79
    %v81 = vsel %vm80, %v73, %v77
    %v82 = vand.u32 2147483647, %v72
    %vm83 = vcmp.eq.f32.partialorder %v82, 8.507059e+37
    %v84 = vand.u32 %v72, 2147483648
    %v85 = vor.u32 1.1754944e-38, %v84
    %v86 = vsel %vm83, %v85, %v81
    %v87 = vmul.f32 %v59, %v86
    %vm88 = vcmask 64512
    %89 = vst.msk [vmem:[#allocation5] sm:$0xff] %vm88, %v87
    // Predicated region
    $region22: #{tpu_custom_call.1} parent=1 // pred_check
      _
    $region23: #{tpu_custom_call.1} parent=1 // pred_check_branch
      %91 = sbr.rel (0) target = $region25
    $region24: #{tpu_custom_call.1} parent=1 // pred_region
      %93 = vsyncadd [#allocation4], 0
      %s95 = sshll.u32 [#allocation5], 4
      %s96 = int_to_ptr.vmem [resolvable:$true] %s95
      %s97 = sshll.u32 %s4, 4
      %s98 = int_to_ptr.hbm [resolvable:$true] %s97
      %100 = dma.vmem_to_hbm [thread:$0]  %s96, 128, %s98, [#allocation4]
    $region25: #{tpu_custom_call.1} parent=1 // pred_fallthru
      _
    // Predicated region
    $region26: #{tpu_custom_call.1} parent=1 // pred_check
      _
    $region27: #{tpu_custom_call.1} parent=1 // pred_check_branch
      %102 = sbr.rel (0) target = $region29
    $region28: #{tpu_custom_call.1} parent=1 // pred_region
      %104 = dma.done [#allocation4], 128
    $region29: #{tpu_custom_call.1} parent=1 // pred_fallthru
      _
    %105 = vsyncpa [#allocation3], 1
    %106 = vsyncpa [#allocation4], 1

</llo_original>
